<compile_context>
chip_gen: v7x
topology: tpu7x:2x2x1
jax: 0.10.0
libtpu: 0.0.40
codegen_flags: <defaults>
</compile_context>

<pallas_src>
import functools

import jax
import jax.numpy as jnp
from jax import lax
from jax.experimental import pallas as pl
from jax.experimental.pallas import tpu as pltpu


def _round_up(x, m):
    return (x + m - 1) // m * m


def _cos_sim_kernel(x_ref, yt_ref, inv_nx_ref, inv_ny_ref, o_ref):
    # x_ref: (TM, H), yt_ref: (H, TN), inv_nx_ref: (TM, 1), inv_ny_ref: (1, TN)
    # Canonical (M,K)x(K,N) matmul on the MXU, f32 accumulation.
    dot = jnp.dot(x_ref[...], yt_ref[...], preferred_element_type=jnp.float32)
    # Epilogue: two broadcast multiplies (1/temp already folded into inv_nx).
    o_ref[...] = (dot * inv_nx_ref[...] * inv_ny_ref[...]).astype(o_ref.dtype)


def similarity(x, y, temp, eps=1e-8, block_m=512, block_n=512,
               prefer_resident_y=True):
    """Pallas implementation of SimCSE Similarity.forward.

    Accepts the SimCSE calling convention:
      x: (B1, 1, H), y: (1, B2, H)  ->  (B1, B2)
    or plain 2-D rows:
      x: (B1, H),    y: (B2, H)     ->  (B1, B2)   (pairwise matrix)
    """
    if x.ndim == 3:
        assert x.shape[1] == 1, "expected x of shape (B1, 1, H)"
        x_rows = x[:, 0, :]
    else:
        x_rows = x
    if y.ndim == 3:
        assert y.shape[0] == 1, "expected y of shape (1, B2, H)"
        y_rows = y[0, :, :]
    else:
        y_rows = y

    b1, h = x_rows.shape
    b2, h2 = y_rows.shape
    assert h == h2, "hidden dims must match"

    # ---- Generation-aware VMEM capacity (v7x: 64 MiB, v5e/v6e: 128 MiB). ----
    try:
        vmem_cap = int(pltpu.get_tpu_info().vmem_capacity_bytes)
    except Exception:
        vmem_cap = 64 * 1024 * 1024  # conservative (v7x) fallback

    xb = x_rows.dtype.itemsize
    yb = y_rows.dtype.itemsize

    # ---- Row-tile size (TM): multiple of 8 sublanes, large for intensity. ----
    tm = min(block_m, _round_up(b1, 8))
    if b1 >= 16:
        # Keep >= 2 row blocks so the "parallel" row axis can occupy both
        # TensorCores on v7x instead of collapsing to a single block.
        tm = min(tm, _round_up((b1 + 1) // 2, 8))
    b1p = _round_up(b1, tm)

    # ---- Column-tile size (TN): multiple of 128 lanes (unmasked stores). ----
    def vmem_need(tn):
        # Double-buffered input/output tiles (+ lane/sublane padding of norms).
        return (2 * tm * h * xb          # x tiles
                + 2 * h * tn * yb        # y^T tiles
                + 2 * tm * tn * 4        # f32 output tiles
                + 2 * tm * 128 * 4       # inv_nx tiles (lane-padded)
                + 2 * 8 * tn * 4)        # inv_ny tiles (sublane-padded)

    tn_full = _round_up(b2, 128)
    if prefer_resident_y and vmem_need(tn_full) <= int(0.55 * vmem_cap):
        # Full-width y block: grid[1] == 1, constant y block index -> y^T is
        # DMA'd once and stays resident in VMEM across all row blocks.
        tn = tn_full
    else:
        tn = min(block_n, tn_full)
    b2p = _round_up(b2, tn)

    # ---- Pad batch dims (zero rows -> dot == 0 -> padded outputs are 0). ----
    if b1p != b1:
        x_rows = jnp.pad(x_rows, ((0, b1p - b1), (0, 0)))
    if b2p != b2:
        y_rows = jnp.pad(y_rows, ((0, b2p - b2), (0, 0)))

    # ---- Wrapper-precomputed inverse norms (f32), 1/temp folded into x's. ----
    inv_temp = 1.0 / float(temp)
    eps2 = float(eps) ** 2
    xf = x_rows.astype(jnp.float32)
    yf = y_rows.astype(jnp.float32)
    # rsqrt(max(s, eps^2)) == 1 / max(sqrt(s), eps)
    inv_nx = lax.rsqrt(
        jnp.maximum(jnp.sum(xf * xf, axis=-1, keepdims=True), eps2)) * inv_temp
    inv_ny = lax.rsqrt(
        jnp.maximum(jnp.sum(yf * yf, axis=-1, keepdims=True), eps2)).T  # (1,b2p)

    # One-time layout plumbing: (B2, H) -> (H, B2) for a canonical MXU matmul.
    yt = y_rows.T
    # NOTE: on v6e/v7x, casting f32 inputs to bf16 here would halve HBM traffic
    # and use the bf16 MXU at full rate; kept in native dtype for f32 parity.

    grid = (b1p // tm, b2p // tn)

    need = vmem_need(tn)
    vmem_limit = min(max(int(1.3 * need) + (1 << 20), 16 * 1024 * 1024),
                     int(0.7 * vmem_cap))

    y_reads = grid[0] if grid[1] > 1 else 1
    cost = pl.CostEstimate(
        flops=2 * b1p * b2p * h,
        transcendentals=0,
        bytes_accessed=(b1p * h * xb
                        + y_reads * b2p * h * yb
                        + b1p * b2p * 4
                        + (b1p + b2p) * 4),
    )

    out = pl.pallas_call(
        _cos_sim_kernel,
        out_shape=jax.ShapeDtypeStruct((b1p, b2p), jnp.float32),
        grid=grid,
        in_specs=[
            pl.BlockSpec((tm, h), lambda i, j: (i, 0)),   # x rows
            pl.BlockSpec((h, tn), lambda i, j: (0, j)),   # y^T columns
            pl.BlockSpec((tm, 1), lambda i, j: (i, 0)),   # (1/temp)/||x_i||
            pl.BlockSpec((1, tn), lambda i, j: (0, j)),   # 1/||y_j||
        ],
        out_specs=pl.BlockSpec((tm, tn), lambda i, j: (i, j)),
        compiler_params=pltpu.CompilerParams(
            dimension_semantics=("parallel", "parallel"),
            vmem_limit_bytes=vmem_limit,
        ),
        cost_estimate=cost,
    )(x_rows, yt, inv_nx, inv_ny)

    if (b1p, b2p) != (b1, b2):
        out = out[:b1, :b2]
    return out


def _reference(x, y, temp, eps=1e-8):
    # Pure-JAX reference mirroring torch.nn.CosineSimilarity(dim=-1).
    xb, yb = jnp.broadcast_arrays(x.astype(jnp.float32), y.astype(jnp.float32))
    dot = jnp.sum(xb * yb, axis=-1)
    nx = jnp.maximum(jnp.linalg.norm(xb, axis=-1), eps)
    ny = jnp.maximum(jnp.linalg.norm(yb, axis=-1), eps)
    return dot / (nx * ny) / temp


if __name__ == "__main__":
    key = jax.random.PRNGKey(0)
    kx, ky, ka, kb = jax.random.split(key, 4)

    temp = 0.05

    # 1) SimCSE calling convention at small shapes: (B,1,H) x (1,B,H) -> (B,B).
    #    Exercises the full-resident-y path (grid == (1, 1)).
    B, H = 8, 32
    x = jax.random.normal(kx, (B, 1, H), dtype=jnp.float32)
    y = jax.random.normal(ky, (1, B, H), dtype=jnp.float32)
    out = jax.block_until_ready(similarity(x, y, temp))
    ref = _reference(x, y, temp)
    assert out.shape == (B, B)
    assert jnp.allclose(out, ref, atol=1e-4, rtol=1e-4)

    # 2) Non-square shapes with small tiles and streaming y, to exercise the
    #    2-D grid, precomputed-norm broadcasts, and the pad/slice path.
    b1, b2, h = 24, 200, 96
    a = jax.random.normal(ka, (b1, h), dtype=jnp.float32)
    b = jax.random.normal(kb, (b2, h), dtype=jnp.float32)
    out2 = jax.block_until_ready(
        similarity(a, b, temp, block_m=8, block_n=128, prefer_resident_y=False))
    ref2 = _reference(a[:, None, :], b[None, :, :], temp)
    assert out2.shape == (b1, b2)
    assert jnp.allclose(out2, ref2, atol=1e-4, rtol=1e-4)

    # 3) Default tiling on a moderately sized problem (resident y, TM cap).
    b1, b2, h = 96, 256, 128
    a3 = jax.random.normal(ka, (b1, h), dtype=jnp.float32)
    b3 = jax.random.normal(kb, (b2, h), dtype=jnp.float32)
    out3 = jax.block_until_ready(similarity(a3, b3, temp))
    ref3 = _reference(a3[:, None, :], b3[None, :, :], temp)
    assert out3.shape == (b1, b2)
    assert jnp.allclose(out3, ref3, atol=1e-4, rtol=1e-4)

    print("KERNEL_OK")
</pallas_src>

<mosaic_0001>
module attributes {stable_mosaic.version = 11 : i64} {
  func.func @_cos_sim_kernel(%arg0: i32, %arg1: i32, %arg2: memref<8x32xf32, #tpu.memory_space<vmem>>, %arg3: memref<32x128xf32, #tpu.memory_space<vmem>>, %arg4: memref<8x1xf32, #tpu.memory_space<vmem>>, %arg5: memref<1x128xf32, #tpu.memory_space<vmem>>, %arg6: memref<8x128xf32, #tpu.memory_space<vmem>>) attributes {dimension_semantics = [#tpu.dimension_semantics<parallel>, #tpu.dimension_semantics<parallel>], iteration_bounds = array<i64: 1, 1>, scalar_prefetch = 0 : i64, scratch_operands = 0 : i64, tpu.core_type = #tpu.core_type<tc>, window_params = [{transform_indices = @transform_0, window_bounds = array<i64: 8, 32>}, {transform_indices = @transform_1, window_bounds = array<i64: 32, 128>}, {transform_indices = @transform_2, window_bounds = array<i64: 8, 1>}, {transform_indices = @transform_3, window_bounds = array<i64: 1, 128>}, {transform_indices = @transform_4, window_bounds = array<i64: 8, 128>}]} {
    %c0 = arith.constant 0 : index
    %c0_0 = arith.constant 0 : index
    %0 = vector.load %arg2[%c0, %c0_0] : memref<8x32xf32, #tpu.memory_space<vmem>>, vector<8x32xf32>
    %c0_1 = arith.constant 0 : index
    %c0_2 = arith.constant 0 : index
    %1 = vector.load %arg3[%c0_1, %c0_2] : memref<32x128xf32, #tpu.memory_space<vmem>>, vector<32x128xf32>
    %cst = arith.constant dense<0.000000e+00> : vector<8x128xf32>
    %2 = tpu.matmul %0, %1, %cst {dimension_numbers = #tpu.dot_dimension_numbers<[1], [0], [0], [1], [0, 0, 1, 1], [], []>} : vector<8x32xf32>, vector<32x128xf32>, vector<8x128xf32> -> vector<8x128xf32>
    %c0_3 = arith.constant 0 : index
    %c0_4 = arith.constant 0 : index
    %3 = vector.load %arg4[%c0_3, %c0_4] : memref<8x1xf32, #tpu.memory_space<vmem>>, vector<8x1xf32>
    %4 = vector.broadcast %3 : vector<8x1xf32> to vector<8x128xf32>
    %5 = arith.mulf %2, %4 : vector<8x128xf32>
    %c0_5 = arith.constant 0 : index
    %c0_6 = arith.constant 0 : index
    %6 = vector.load %arg5[%c0_5, %c0_6] : memref<1x128xf32, #tpu.memory_space<vmem>>, vector<1x128xf32>
    %7 = vector.broadcast %6 : vector<1x128xf32> to vector<8x128xf32>
    %8 = arith.mulf %5, %7 : vector<8x128xf32>
    %c0_7 = arith.constant 0 : index
    %c0_8 = arith.constant 0 : index
    %9 = vector.load %arg6[%c0_7, %c0_8] : memref<8x128xf32, #tpu.memory_space<vmem>>, vector<8x128xf32>
    tpu.vector_store %arg6[%c0_7, %c0_8], %8 {strides = array<i32>} : memref<8x128xf32, #tpu.memory_space<vmem>>, vector<8x128xf32>,
    return
  }
  func.func @transform_0(%arg0: i32, %arg1: i32) -> (i32, i32) {
    %c0_i32 = arith.constant 0 : i32
    %c0_i32_0 = arith.constant 0 : i32
    return %arg0, %c0_i32 : i32, i32
  }
  func.func @transform_1(%arg0: i32, %arg1: i32) -> (i32, i32) {
    %c0_i32 = arith.constant 0 : i32
    %c0_i32_0 = arith.constant 0 : i32
    return %c0_i32, %arg1 : i32, i32
  }
  func.func @transform_2(%arg0: i32, %arg1: i32) -> (i32, i32) {
    %c0_i32 = arith.constant 0 : i32
    %c0_i32_0 = arith.constant 0 : i32
    return %arg0, %c0_i32 : i32, i32
  }
  func.func @transform_3(%arg0: i32, %arg1: i32) -> (i32, i32) {
    %c0_i32 = arith.constant 0 : i32
    %c0_i32_0 = arith.constant 0 : i32
    return %c0_i32, %arg1 : i32, i32
  }
  func.func @transform_4(%arg0: i32, %arg1: i32) -> (i32, i32) {
    %c0_i32 = arith.constant 0 : i32
    return %arg0, %arg1 : i32, i32
  }
}

</mosaic_0001>

<llo_original>
// kernel: tpu_custom_call.1
$region0: #{tpu_custom_call.1}
  #allocation0 [shape = 'u32[]', space=smem, size = 0x4, offset = 0x4, fixed_abs, tag = 'smem constant byte address 0x4 - core index']
  #allocation1 [shape = 'u32[144,128]{1,0:T(1,128)}', space=vmem, size = 0x12000, scoped, tag = 'internal scratch']
  %s0 = inlined_call_operand.vmem [shape: f32[8,32], index: 0, kind: input, shape index: {}]
  %s1 = inlined_call_operand.hbm [shape: f32[32,128], index: 1, kind: input, shape index: {}]
  %s2 = inlined_call_operand.vmem [shape: f32[8,1], index: 2, kind: input, shape index: {}]
  %s3 = inlined_call_operand.vmem [shape: f32[1,128], index: 3, kind: input, shape index: {}]
  %s4 = inlined_call_operand.hbm [shape: f32[8,128], index: 4, kind: output, shape index: {}]
  %s5 = sld [smem:[#allocation0]]
  $region30: #{tpu_custom_call.1} parent=0
    _
  %s7 = ssub.s32 1, %s5
  %s8 = scalar_select 0, %s7, %s5
  $region1: #{tpu_custom_call.1} parent=0
    #allocation2 [shape = 'u8[16384]{0}', space=vmem, size = 0x4000, scoped, tag = 'input window, operand 1, single buffered']
    #allocation3 [shape = 's32[1]{0}', space=sflag, size = 0x4, scoped, tag = 'scoped memory for tpu_custom_call.1']
    #allocation4 [shape = 's32[1]{0}', space=sflag, size = 0x4, scoped, tag = 'scoped memory for tpu_custom_call.1']
    #allocation5 [shape = 'u8[4096]{0}', space=vmem, size = 0x1000, scoped, tag = 'output window, operand 0, single buffered']
    %9 = vsyncpa [#allocation3], 0
    %10 = vsyncpa [#allocation4], 0
    // Predicated region
    $region2: #{tpu_custom_call.1} parent=1 // pred_check
      _
    $region3: #{tpu_custom_call.1} parent=1 // pred_check_branch
      %12 = sbr.rel (0) target = $region5
    $region4: #{tpu_custom_call.1} parent=1 // pred_region
      _
    $region5: #{tpu_custom_call.1} parent=1 // pred_fallthru
      _
    // Predicated region
    $region6: #{tpu_custom_call.1} parent=1 // pred_check
      _
    $region7: #{tpu_custom_call.1} parent=1 // pred_check_branch
      %14 = sbr.rel (0) target = $region9
    $region8: #{tpu_custom_call.1} parent=1 // pred_region
      %s16 = ssub.s32 512, 512
      %17 = vsyncadd [#allocation3], %s16
      %s18 = sshll.u32 [#allocation2], 4
      %s19 = int_to_ptr.vmem [resolvable:$true] %s18
      %24 = dma.hbm_to_vmem [thread:$0]  %s1, 512, %s19, [#allocation3], 128, 128, 8
    $region9: #{tpu_custom_call.1} parent=1 // pred_fallthru
      _
    // Predicated region
    $region10: #{tpu_custom_call.1} parent=1 // pred_check
      _
    $region11: #{tpu_custom_call.1} parent=1 // pred_check_branch
      %26 = sbr.rel (0) target = $region13
    $region12: #{tpu_custom_call.1} parent=1 // pred_region
      _
    $region13: #{tpu_custom_call.1} parent=1 // pred_fallthru
      _
    // Predicated region
    $region14: #{tpu_custom_call.1} parent=1 // pred_check
      _
    $region15: #{tpu_custom_call.1} parent=1 // pred_check_branch
      %28 = sbr.rel (0) target = $region17
    $region16: #{tpu_custom_call.1} parent=1 // pred_region
      _
    $region17: #{tpu_custom_call.1} parent=1 // pred_fallthru
      _
    // Predicated region
    $region18: #{tpu_custom_call.1} parent=1 // pred_check
      _
    $region19: #{tpu_custom_call.1} parent=1 // pred_check_branch
      %30 = sbr.rel (0) target = $region21
    $region20: #{tpu_custom_call.1} parent=1 // pred_region
      %31 = dma.done [#allocation3], 512
    $region21: #{tpu_custom_call.1} parent=1 // pred_fallthru
      _
    %v32 = vld [vmem:[%s0] sm:$0xff]
    %v33 = vld [vmem:[#allocation2] sm:$0xff]
    %v34 = vld [vmem:[#allocation2 + $0x8] sm:$0xff]
    %v35 = vld [vmem:[#allocation2 + $0x10] sm:$0xff]
    %v36 = vld [vmem:[#allocation2 + $0x18] sm:$0xff]
    %vm37 = vcmask 261120
    %v39 = vsel %vm37, %v32, 0
    %41 = vmatprep.subr.mxu0 0.0
    %42 = vmatpush1.msra.mxu0 %v33
    %43 = vmatprep.subr.mxu0 0.0
    %44 = vmatpush1.msra.mxu0 %v34
    %45 = vmatprep.subr.mxu0 0.0
    %46 = vmatpush1.msra.mxu0 %v35
    %47 = vmatprep.subr.mxu0 0.0
    %48 = vmatpush1.msra.mxu0 %v36
    %49 = vmatprep.subr.mxu0 0.0
    %50 = vmatpush1.msra.mxu0 0.0
    %51 = vmatprep.subr.mxu0 0.0
    %52 = vmatpush1.msra.mxu0 0.0
    %53 = vmatprep.subr.mxu0 0.0
    %54 = vmatpush1.msra.mxu0 0.0
    %55 = vmatprep.subr.mxu0 0.0
    %56 = vmatpush1.msra.mxu0 0.0
    %57 = vmatprep.subr.mxu0 0.0
    %58 = vmatpush1.msra.mxu0 0.0
    %59 = vmatprep.subr.mxu0 0.0
    %60 = vmatpush1.msra.mxu0 0.0
    %61 = vmatprep.subr.mxu0 0.0
    %62 = vmatpush1.msra.mxu0 0.0
    %63 = vmatprep.subr.mxu0 0.0
    %64 = vmatpush1.msra.mxu0 0.0
    %65 = vmatprep.subr.mxu0 0.0
    %66 = vmatpush1.msra.mxu0 0.0
    %67 = vmatprep.subr.mxu0 0.0
    %68 = vmatpush1.msra.mxu0 0.0
    %69 = vmatprep.subr.mxu0 0.0
    %70 = vmatpush1.msra.mxu0 0.0
    %71 = vmatprep.subr.mxu0 0.0
    %72 = vmatpush1.msra.mxu0 0.0
    %73 = vmatprep.subr.mxu0 0.0
    %74 = vmatpush1.msra.mxu0 0.0
    %75 = vmatprep.subr.mxu0 0.0
    %76 = vmatpush1.msra.mxu0 0.0
    %77 = vmatprep.subr.mxu0 0.0
    %78 = vmatpush1.msra.mxu0 0.0
    %79 = vmatprep.subr.mxu0 0.0
    %80 = vmatpush1.msra.mxu0 0.0
    %81 = vmatprep.subr.mxu0 0.0
    %82 = vmatpush1.msra.mxu0 0.0
    %83 = vmatprep.subr.mxu0 0.0
    %84 = vmatpush1.msra.mxu0 0.0
    %85 = vmatprep.subr.mxu0 0.0
    %86 = vmatpush1.msra.mxu0 0.0
    %87 = vmatprep.subr.mxu0 0.0
    %88 = vmatpush1.msra.mxu0 0.0
    %89 = vmatprep.subr.mxu0 0.0
    %90 = vmatpush1.msra.mxu0 0.0
    %91 = vmatprep.subr.mxu0 0.0
    %92 = vmatpush1.msra.mxu0 0.0
    %93 = vmatprep.subr.mxu0 0.0
    %94 = vmatpush1.msra.mxu0 0.0
    %95 = vmatprep.subr.mxu0 0.0
    %96 = vmatpush1.msra.mxu0 0.0
    %97 = vmatprep.subr.mxu0 0.0
    %98 = vmatpush1.msra.mxu0 0.0
    %99 = vmatprep.subr.mxu0 0.0
    %100 = vmatpush1.msra.mxu0 0.0
    %101 = vmatprep.subr.mxu0 0.0
    %102 = vmatpush1.msra.mxu0 0.0
    %103 = vmatprep.subr.mxu0 0.0
    %104 = vmatpush1.msra.mxu0 0.0
    %105 = vmatprep.mubr.f32.mxu0 0.0
    %106 = vmatmul.mubr.f32.gmra.mrb[0].mxu0 %v39
    %v107 = vpop.f32.mrb[0].mxu0
    %v108 = vadd.f32 0.0, %v107
    %v109 = vpop.f32.mrb[0].mxu0
    %110 = vdwg.mxu0
    %v111 = vld [vmem:[%s2] sm:$0xff]
    %113 = vset.pattern.permute.xlu0 0
    %114 = vperm.xlu0 %113, %v111
    %v115 = vpop.permute.xlu0 %114
    %v117 = vmul.f32 %v108, %v115
    %v118 = vld [vmem:[%s3] sm:$0x1]
    %v120 = vlaneseq
    %v121 = vshrl.u32 %v120, 7
    %v122 = vsub.s32 0, %v121
    %v123 = vrot.slane %v118, %v122
    %v125 = vmul.f32 %v117, %v123
    %126 = vst [vmem:[#allocation5] sm:$0xff] %v125
    // Predicated region
    $region22: #{tpu_custom_call.1} parent=1 // pred_check
      _
    $region23: #{tpu_custom_call.1} parent=1 // pred_check_branch
      %128 = sbr.rel (0) target = $region25
    $region24: #{tpu_custom_call.1} parent=1 // pred_region
      %s130 = ssub.s32 128, 128
      %131 = vsyncadd [#allocation4], %s130
      %s133 = sshll.u32 [#allocation5], 4
      %s134 = int_to_ptr.vmem [resolvable:$true] %s133
      %136 = dma.vmem_to_hbm [thread:$0]  %s134, 128, %s4, [#allocation4]
    $region25: #{tpu_custom_call.1} parent=1 // pred_fallthru
      _
    // Predicated region
    $region26: #{tpu_custom_call.1} parent=1 // pred_check
      _
    $region27: #{tpu_custom_call.1} parent=1 // pred_check_branch
      %138 = sbr.rel (0) target = $region29
    $region28: #{tpu_custom_call.1} parent=1 // pred_region
      %139 = dma.done [#allocation4], 128
    $region29: #{tpu_custom_call.1} parent=1 // pred_fallthru
      _
    %140 = vsyncpa [#allocation3], 1
    %141 = vsyncpa [#allocation4], 1

</llo_original>
